<compile_context>
chip_gen: v7x
topology: tpu7x:2x2x1
jax: 0.10.0
libtpu: 0.0.40
codegen_flags: <defaults>
</compile_context>

<pallas_src>
import functools
import math

import jax
import jax.numpy as jnp
from jax.experimental import pallas as pl
from jax.experimental.pallas import tpu as pltpu

LANE = 128


def _round_up(x, m):
    return ((x + m - 1) // m) * m


def _choose_tiling(batch, tile_b):
    """Pad the batch to the bf16 sublane granule (16) and pick a dividing tile."""
    b_pad = _round_up(max(batch, 1), 16)
    tile = min(max(16, _round_up(tile_b, 16)), b_pad)
    while b_pad % tile:          # shrink (multiples of 16) until it divides
        tile -= 16
    # v7x: expose >= 2 grid steps so the "parallel" axis shards across both TCs.
    if b_pad // tile == 1 and b_pad >= 32 and (b_pad // 2) % 16 == 0:
        tile = b_pad // 2
    return b_pad, tile


# --------------------------------------------------------------------------- kernel
def _dueling_mlp_kernel(action_size,
                        x_ref, w1_ref, b1_ref, w2_ref, b2_ref, w3_ref, b3_ref,
                        q_ref, s_ref):
    # x:(TILE_B,S) bf16; w1:(S,128) w2:(128,128) w3:(128,OUT) bf16; b*: f32 rows.
    x = x_ref[...]
    h1 = jnp.dot(x, w1_ref[...], preferred_element_type=jnp.float32) + b1_ref[...]
    h1 = jnp.maximum(h1, 0.0).astype(jnp.bfloat16)          # feature = ReLU(fc_feature_1)
    h2 = jnp.dot(h1, w2_ref[...], preferred_element_type=jnp.float32) + b2_ref[...]
    h2 = jnp.maximum(h2, 0.0).astype(jnp.bfloat16)          # [ReLU(adv_1) | ReLU(val_1)]
    out = jnp.dot(h2, w3_ref[...], preferred_element_type=jnp.float32) + b3_ref[...]
    # out lanes: [adv_0 .. adv_{A-1}, value, 0 ...]
    value = out[:, action_size:action_size + 1]
    q_ref[...] = out + value                                 # value + advantage (adv lanes)
    col = jax.lax.broadcasted_iota(jnp.int32, out.shape, 1)
    # Per-row advantage sum (padded batch rows are sliced away in the wrapper before
    # the global mean, so no row masking is needed here).
    s_ref[...] = jnp.sum(jnp.where(col < action_size, out, 0.0),
                         axis=-1, keepdims=True)


# --------------------------------------------------------------------------- wrapper
def noisy_dueling_q_forward(x, packed, *, action_size, tile_b=512):
    w1, b1, w2, b2, w3, b3 = packed
    B, S = x.shape
    S_pad, H1_pad = w1.shape
    HP = w2.shape[1]
    OUT_pad = w3.shape[1]

    B_pad, tile = _choose_tiling(B, tile_b)

    # Pad batch rows (explicit zero fill) + minimal state padding; bf16 for the MXU.
    xp = jnp.zeros((B_pad, S_pad), jnp.bfloat16).at[:B, :S].set(x.astype(jnp.bfloat16))

    grid = (B_pad // tile,)

    def resident(shape):  # weights/biases stay in VMEM across all batch tiles
        return pl.BlockSpec(shape, lambda i: (0, 0))

    flops = 2 * B_pad * (S_pad * H1_pad + H1_pad * HP + HP * OUT_pad)
    bytes_accessed = (xp.size * 2
                      + (w1.size + w2.size + w3.size) * 2
                      + (b1.size + b2.size + b3.size) * 4
                      + B_pad * (OUT_pad + 1) * 4)

    q_padded, adv_rowsum = pl.pallas_call(
        functools.partial(_dueling_mlp_kernel, action_size),
        out_shape=(jax.ShapeDtypeStruct((B_pad, OUT_pad), jnp.float32),
                   jax.ShapeDtypeStruct((B_pad, 1), jnp.float32)),
        grid=grid,
        in_specs=[
            pl.BlockSpec((tile, S_pad), lambda i: (i, 0)),   # streamed batch tile
            resident(w1.shape), resident(b1.shape),
            resident(w2.shape), resident(b2.shape),
            resident(w3.shape), resident(b3.shape),
        ],
        out_specs=[pl.BlockSpec((tile, OUT_pad), lambda i: (i, 0)),
                   pl.BlockSpec((tile, 1), lambda i: (i, 0))],
        compiler_params=pltpu.CompilerParams(dimension_semantics=("parallel",)),
        cost_estimate=pl.CostEstimate(flops=flops, transcendentals=0,
                                      bytes_accessed=bytes_accessed),
    )(xp, w1, b1, w2, b2, w3, b3)

    # Dueling aggregation: Q = value + advantage - advantage.mean() with a GLOBAL
    # scalar mean over the whole (B, action_size) advantage tensor, matching the
    # PyTorch module (advantage.mean() with no dim argument).
    # TODO(synk): the scalar mean spans all batch tiles (and both TCs on v7x), so the
    #             final scalar reduction/subtraction stays in plain JAX.
    adv_mean = jnp.sum(adv_rowsum[:B, 0]) / (B * action_size)
    return q_padded[:B, :action_size] - adv_mean


# ------------------------------------------------- NoisyLinear parameterization (JAX)
def noisy_linear_init(key, in_f, out_f, std_init=0.4):
    kw, kb = jax.random.split(key)
    mu_range = 1.0 / math.sqrt(in_f)
    return dict(
        weight_mu=jax.random.uniform(kw, (out_f, in_f), jnp.float32, -mu_range, mu_range),
        weight_sigma=jnp.full((out_f, in_f), std_init / math.sqrt(in_f), jnp.float32),
        bias_mu=jax.random.uniform(kb, (out_f,), jnp.float32, -mu_range, mu_range),
        bias_sigma=jnp.full((out_f,), std_init / math.sqrt(out_f), jnp.float32),
    )


def _scale_noise(key, size):
    v = jax.random.normal(key, (size,), jnp.float32)
    return jnp.sign(v) * jnp.sqrt(jnp.abs(v))


def noisy_linear_reset_noise(key, in_f, out_f):
    k_in, k_out, k_b = jax.random.split(key, 3)
    eps_in = _scale_noise(k_in, in_f)
    eps_out = _scale_noise(k_out, out_f)
    return jnp.outer(eps_out, eps_in), _scale_noise(k_b, out_f)


def noisy_linear_effective(p, noise, training=True):
    w_eps, b_eps = noise
    if training:
        w = p["weight_mu"] + p["weight_sigma"] * w_eps
        b = p["bias_mu"] + p["bias_sigma"] * b_eps
    else:
        w, b = p["weight_mu"], p["bias_mu"]
    return w.T, b   # (in, out), (out,)  so  y = x @ w + b  ==  F.linear(x, W, bias)


# ----------------------------------------------------------- pad/pack for the kernel
def pack_for_kernel(eff, state_size, action_size, fc1, fc2):
    S_pad = _round_up(state_size, 8)            # minimal state padding (no 128 inflation)
    H1_pad = _round_up(fc1, LANE)
    HP = _round_up(2 * fc2, LANE)               # packed [advantage | value] hidden width
    OUT_pad = _round_up(action_size + 1, 8)     # adv cols + 1 value col, narrow output

    wf, bf = eff["feature"]
    wa1, ba1 = eff["adv1"]
    wa2, ba2 = eff["adv2"]
    wv1, bv1 = eff["val1"]
    wv2, bv2 = eff["val2"]

    w1 = jnp.zeros((S_pad, H1_pad), jnp.float32).at[:state_size, :fc1].set(wf)
    b1 = jnp.zeros((1, H1_pad), jnp.float32).at[0, :fc1].set(bf)

    w2 = (jnp.zeros((H1_pad, HP), jnp.float32)
          .at[:fc1, :fc2].set(wa1)
          .at[:fc1, fc2:2 * fc2].set(wv1))
    b2 = (jnp.zeros((1, HP), jnp.float32)
          .at[0, :fc2].set(ba1)
          .at[0, fc2:2 * fc2].set(bv1))

    w3 = (jnp.zeros((HP, OUT_pad), jnp.float32)
          .at[:fc2, :action_size].set(wa2)
          .at[fc2:2 * fc2, action_size:action_size + 1].set(wv2))
    b3 = (jnp.zeros((1, OUT_pad), jnp.float32)
          .at[0, :action_size].set(ba2)
          .at[0, action_size].set(bv2[0]))

    # Weights at rest in bf16 (native MXU rate, half the DMA); biases stay f32.
    return (w1.astype(jnp.bfloat16), b1,
            w2.astype(jnp.bfloat16), b2,
            w3.astype(jnp.bfloat16), b3)


if __name__ == "__main__":
    state_size, action_size = 8, 4
    fc1_units, fc2_units = 64, 64
    batch = 2

    root = jax.random.PRNGKey(0)
    k_x, k_p, k_n = jax.random.split(root, 3)

    x = jax.random.normal(k_x, (batch, state_size), jnp.float32)

    layer_dims = {
        "feature": (state_size, fc1_units),
        "adv1": (fc1_units, fc2_units),
        "adv2": (fc2_units, action_size),
        "val1": (fc1_units, fc2_units),
        "val2": (fc2_units, 1),
    }
    p_keys = jax.random.split(k_p, len(layer_dims))
    n_keys = jax.random.split(k_n, len(layer_dims))
    eff = {}
    for (name, (fi, fo)), pk, nk in zip(layer_dims.items(), p_keys, n_keys):
        params = noisy_linear_init(pk, fi, fo)
        noise = noisy_linear_reset_noise(nk, fi, fo)
        eff[name] = noisy_linear_effective(params, noise, training=True)

    packed = pack_for_kernel(eff, state_size, action_size, fc1_units, fc2_units)

    q = noisy_dueling_q_forward(x, packed, action_size=action_size)
    q = jax.block_until_ready(q)
    assert q.shape == (batch, action_size)

    # --- reference 1: exact module semantics, f32, unpadded/unpacked ----------------
    wf, bf = eff["feature"]; wa1, ba1 = eff["adv1"]; wa2, ba2 = eff["adv2"]
    wv1, bv1 = eff["val1"];  wv2, bv2 = eff["val2"]
    feat = jnp.maximum(x @ wf + bf, 0.0)
    adv = jnp.maximum(feat @ wa1 + ba1, 0.0) @ wa2 + ba2
    val = jnp.maximum(feat @ wv1 + bv1, 0.0) @ wv2 + bv2
    q_ref_f32 = val + adv - jnp.mean(adv)
    assert jnp.allclose(q, q_ref_f32, atol=5e-2, rtol=5e-2), "mismatch vs f32 module reference"

    # --- reference 2: identical padded/packed bf16 computation in plain JAX ---------
    w1, b1, w2, b2, w3, b3 = packed
    xb = jnp.zeros((batch, w1.shape[0]), jnp.bfloat16).at[:, :state_size].set(
        x.astype(jnp.bfloat16))
    h1 = jnp.maximum(jnp.dot(xb, w1, preferred_element_type=jnp.float32) + b1, 0.0
                     ).astype(jnp.bfloat16)
    h2 = jnp.maximum(jnp.dot(h1, w2, preferred_element_type=jnp.float32) + b2, 0.0
                     ).astype(jnp.bfloat16)
    out_ref = jnp.dot(h2, w3, preferred_element_type=jnp.float32) + b3
    adv_p = out_ref[:, :action_size]
    val_p = out_ref[:, action_size:action_size + 1]
    q_ref_packed = val_p + adv_p - jnp.mean(adv_p)
    assert jnp.allclose(q, q_ref_packed, atol=2e-3, rtol=2e-3), "mismatch vs packed bf16 reference"

    print("KERNEL_OK")
</pallas_src>

<mosaic_0001>
module attributes {stable_mosaic.version = 11 : i64} {
  func.func @_dueling_mlp_kernel(%arg0: i32, %arg1: memref<16x8xbf16, #tpu.memory_space<vmem>>, %arg2: memref<8x128xbf16, #tpu.memory_space<vmem>>, %arg3: memref<1x128xf32, #tpu.memory_space<vmem>>, %arg4: memref<128x128xbf16, #tpu.memory_space<vmem>>, %arg5: memref<1x128xf32, #tpu.memory_space<vmem>>, %arg6: memref<128x8xbf16, #tpu.memory_space<vmem>>, %arg7: memref<1x8xf32, #tpu.memory_space<vmem>>, %arg8: memref<16x8xf32, #tpu.memory_space<vmem>>, %arg9: memref<16x1xf32, #tpu.memory_space<vmem>>) attributes {dimension_semantics = [#tpu.dimension_semantics<parallel>], iteration_bounds = array<i64: 1>, scalar_prefetch = 0 : i64, scratch_operands = 0 : i64, tpu.core_type = #tpu.core_type<tc>, window_params = [{transform_indices = @transform_0, window_bounds = array<i64: 16, 8>}, {pipeline_mode = #tpu.pipeline_mode<synchronous>, transform_indices = @transform_1, window_bounds = array<i64: 8, 128>}, {pipeline_mode = #tpu.pipeline_mode<synchronous>, transform_indices = @transform_2, window_bounds = array<i64: 1, 128>}, {pipeline_mode = #tpu.pipeline_mode<synchronous>, transform_indices = @transform_3, window_bounds = array<i64: 128, 128>}, {pipeline_mode = #tpu.pipeline_mode<synchronous>, transform_indices = @transform_4, window_bounds = array<i64: 1, 128>}, {pipeline_mode = #tpu.pipeline_mode<synchronous>, transform_indices = @transform_5, window_bounds = array<i64: 128, 8>}, {pipeline_mode = #tpu.pipeline_mode<synchronous>, transform_indices = @transform_6, window_bounds = array<i64: 1, 8>}, {transform_indices = @transform_7, window_bounds = array<i64: 16, 8>}, {transform_indices = @transform_8, window_bounds = array<i64: 16, 1>}]} {
    %c0 = arith.constant 0 : index
    %c0_0 = arith.constant 0 : index
    %0 = vector.load %arg1[%c0, %c0_0] : memref<16x8xbf16, #tpu.memory_space<vmem>>, vector<16x8xbf16>
    %c0_1 = arith.constant 0 : index
    %c0_2 = arith.constant 0 : index
    %1 = vector.load %arg2[%c0_1, %c0_2] : memref<8x128xbf16, #tpu.memory_space<vmem>>, vector<8x128xbf16>
    %cst = arith.constant dense<0.000000e+00> : vector<16x128xf32>
    %2 = tpu.matmul %0, %1, %cst {dimension_numbers = #tpu.dot_dimension_numbers<[1], [0], [0], [1], [0, 0, 1, 1], [], []>} : vector<16x8xbf16>, vector<8x128xbf16>, vector<16x128xf32> -> vector<16x128xf32>
    %c0_3 = arith.constant 0 : index
    %c0_4 = arith.constant 0 : index
    %3 = vector.load %arg3[%c0_3, %c0_4] : memref<1x128xf32, #tpu.memory_space<vmem>>, vector<1x128xf32>
    %4 = vector.broadcast %3 : vector<1x128xf32> to vector<16x128xf32>
    %5 = arith.addf %2, %4 : vector<16x128xf32>
    %cst_5 = arith.constant 0.000000e+00 : f32
    %6 = vector.broadcast %cst_5 : f32 to vector<16x128xf32>
    %7 = arith.maximumf %5, %6 : vector<16x128xf32>
    %8 = arith.truncf %7 : vector<16x128xf32> to vector<16x128xbf16>
    %c0_6 = arith.constant 0 : index
    %c0_7 = arith.constant 0 : index
    %9 = vector.load %arg4[%c0_6, %c0_7] : memref<128x128xbf16, #tpu.memory_space<vmem>>, vector<128x128xbf16>
    %cst_8 = arith.constant dense<0.000000e+00> : vector<16x128xf32>
    %10 = tpu.matmul %8, %9, %cst_8 {dimension_numbers = #tpu.dot_dimension_numbers<[1], [0], [0], [1], [0, 0, 1, 1], [], []>} : vector<16x128xbf16>, vector<128x128xbf16>, vector<16x128xf32> -> vector<16x128xf32>
    %c0_9 = arith.constant 0 : index
    %c0_10 = arith.constant 0 : index
    %11 = vector.load %arg5[%c0_9, %c0_10] : memref<1x128xf32, #tpu.memory_space<vmem>>, vector<1x128xf32>
    %12 = vector.broadcast %11 : vector<1x128xf32> to vector<16x128xf32>
    %13 = arith.addf %10, %12 : vector<16x128xf32>
    %cst_11 = arith.constant 0.000000e+00 : f32
    %14 = vector.broadcast %cst_11 : f32 to vector<16x128xf32>
    %15 = arith.maximumf %13, %14 : vector<16x128xf32>
    %16 = arith.truncf %15 : vector<16x128xf32> to vector<16x128xbf16>
    %c0_12 = arith.constant 0 : index
    %c0_13 = arith.constant 0 : index
    %17 = vector.load %arg6[%c0_12, %c0_13] : memref<128x8xbf16, #tpu.memory_space<vmem>>, vector<128x8xbf16>
    %cst_14 = arith.constant dense<0.000000e+00> : vector<16x8xf32>
    %18 = tpu.matmul %16, %17, %cst_14 {dimension_numbers = #tpu.dot_dimension_numbers<[1], [0], [0], [1], [0, 0, 1, 1], [], []>} : vector<16x128xbf16>, vector<128x8xbf16>, vector<16x8xf32> -> vector<16x8xf32>
    %c0_15 = arith.constant 0 : index
    %c0_16 = arith.constant 0 : index
    %19 = vector.load %arg7[%c0_15, %c0_16] : memref<1x8xf32, #tpu.memory_space<vmem>>, vector<1x8xf32>
    %20 = vector.broadcast %19 : vector<1x8xf32> to vector<16x8xf32>
    %21 = arith.addf %18, %20 : vector<16x8xf32>
    %22 = vector.extract_strided_slice %21 {offsets = [0, 4], sizes = [16, 1], strides = [1, 1]} : vector<16x8xf32> to vector<16x1xf32>
    %23 = vector.broadcast %22 : vector<16x1xf32> to vector<16x8xf32>
    %24 = arith.addf %21, %23 : vector<16x8xf32>
    %c0_17 = arith.constant 0 : index
    %c0_18 = arith.constant 0 : index
    %25 = vector.load %arg8[%c0_17, %c0_18] : memref<16x8xf32, #tpu.memory_space<vmem>>, vector<16x8xf32>
    tpu.vector_store %arg8[%c0_17, %c0_18], %24 {strides = array<i32>} : memref<16x8xf32, #tpu.memory_space<vmem>>, vector<16x8xf32>,
    %26 = tpu.iota {dimensions = array<i32: 1>} : vector<16x8xi32>
    %c4_i32 = arith.constant 4 : i32
    %27 = vector.broadcast %c4_i32 : i32 to vector<16x8xi32>
    %28 = arith.cmpi slt, %26, %27 : vector<16x8xi32>
    %cst_19 = arith.constant 0.000000e+00 : f32
    %29 = vector.broadcast %cst_19 : f32 to vector<16x8xf32>
    %30 = arith.select %28, %21, %29 : vector<16x8xi1>, vector<16x8xf32>
    %cst_20 = arith.constant dense<0.000000e+00> : vector<16xf32>
    %31 = vector.multi_reduction <add>, %30, %cst_20 [1] : vector<16x8xf32> to vector<16xf32>
    %32 = vector.shape_cast %31 : vector<16xf32> to vector<16x1xf32>
    %c0_21 = arith.constant 0 : index
    %c0_22 = arith.constant 0 : index
    %33 = vector.load %arg9[%c0_21, %c0_22] : memref<16x1xf32, #tpu.memory_space<vmem>>, vector<16x1xf32>
    tpu.vector_store %arg9[%c0_21, %c0_22], %32 {strides = array<i32>} : memref<16x1xf32, #tpu.memory_space<vmem>>, vector<16x1xf32>,
    return
  }
  func.func @transform_0(%arg0: i32) -> (i32, i32) {
    %c0_i32 = arith.constant 0 : i32
    %c0_i32_0 = arith.constant 0 : i32
    return %arg0, %c0_i32 : i32, i32
  }
  func.func @transform_1(%arg0: i32) -> (i32, i32) {
    %c0_i32 = arith.constant 0 : i32
    %c0_i32_0 = arith.constant 0 : i32
    %c0_i32_1 = arith.constant 0 : i32
    return %c0_i32, %c0_i32_0 : i32, i32
  }
  func.func @transform_2(%arg0: i32) -> (i32, i32) {
    %c0_i32 = arith.constant 0 : i32
    %c0_i32_0 = arith.constant 0 : i32
    %c0_i32_1 = arith.constant 0 : i32
    return %c0_i32, %c0_i32_0 : i32, i32
  }
  func.func @transform_3(%arg0: i32) -> (i32, i32) {
    %c0_i32 = arith.constant 0 : i32
    %c0_i32_0 = arith.constant 0 : i32
    %c0_i32_1 = arith.constant 0 : i32
    return %c0_i32, %c0_i32_0 : i32, i32
  }
  func.func @transform_4(%arg0: i32) -> (i32, i32) {
    %c0_i32 = arith.constant 0 : i32
    %c0_i32_0 = arith.constant 0 : i32
    %c0_i32_1 = arith.constant 0 : i32
    return %c0_i32, %c0_i32_0 : i32, i32
  }
  func.func @transform_5(%arg0: i32) -> (i32, i32) {
    %c0_i32 = arith.constant 0 : i32
    %c0_i32_0 = arith.constant 0 : i32
    %c0_i32_1 = arith.constant 0 : i32
    return %c0_i32, %c0_i32_0 : i32, i32
  }
  func.func @transform_6(%arg0: i32) -> (i32, i32) {
    %c0_i32 = arith.constant 0 : i32
    %c0_i32_0 = arith.constant 0 : i32
    %c0_i32_1 = arith.constant 0 : i32
    return %c0_i32, %c0_i32_0 : i32, i32
  }
  func.func @transform_7(%arg0: i32) -> (i32, i32) {
    %c0_i32 = arith.constant 0 : i32
    %c0_i32_0 = arith.constant 0 : i32
    return %arg0, %c0_i32 : i32, i32
  }
  func.func @transform_8(%arg0: i32) -> (i32, i32) {
    %c0_i32 = arith.constant 0 : i32
    %c0_i32_0 = arith.constant 0 : i32
    return %arg0, %c0_i32 : i32, i32
  }
}

</mosaic_0001>

<llo_original>
// kernel: tpu_custom_call.1
$region0: #{tpu_custom_call.1}
  #allocation0 [shape = 'u32[]', space=smem, size = 0x4, offset = 0x4, fixed_abs, tag = 'smem constant byte address 0x4 - core index']
  #allocation1 [shape = 'u32[144,128]{1,0:T(1,128)}', space=vmem, size = 0x12000, scoped, tag = 'internal scratch']
  %s0 = inlined_call_operand.vmem [shape: bf16[16,8], index: 0, kind: input, shape index: {}]
  %s1 = inlined_call_operand.vmem [shape: bf16[8,128], index: 1, kind: input, shape index: {}]
  %s2 = inlined_call_operand.vmem [shape: f32[1,128], index: 2, kind: input, shape index: {}]
  %s3 = inlined_call_operand.vmem [shape: bf16[128,128], index: 3, kind: input, shape index: {}]
  %s4 = inlined_call_operand.vmem [shape: f32[1,128], index: 4, kind: input, shape index: {}]
  %s5 = inlined_call_operand.vmem [shape: bf16[128,8], index: 5, kind: input, shape index: {}]
  %s6 = inlined_call_operand.vmem [shape: f32[1,8], index: 6, kind: input, shape index: {}]
  %s7 = inlined_call_operand.vmem [shape: f32[16,8], index: 7, kind: output, shape index: {0}]
  %s8 = inlined_call_operand.vmem [shape: f32[16,1], index: 8, kind: output, shape index: {1}]
  %9 = xla_tuple %s7, %s8
  %s10 = sld [smem:[#allocation0]]
  $region46: #{tpu_custom_call.1} parent=0
    _
  %s12 = ssub.s32 1, %s10
  %s13 = scalar_select 0, %s12, %s10
  // Predicated region
  $region2: #{tpu_custom_call.1} parent=0 // pred_check
    _
  $region3: #{tpu_custom_call.1} parent=0 // pred_check_branch
    %15 = sbr.rel (0) target = $region5
  $region4: #{tpu_custom_call.1} parent=0 // pred_region
    _
  $region5: #{tpu_custom_call.1} parent=0 // pred_fallthru
    _
  // Predicated region
  $region6: #{tpu_custom_call.1} parent=0 // pred_check
    _
  $region7: #{tpu_custom_call.1} parent=0 // pred_check_branch
    %17 = sbr.rel (0) target = $region9
  $region8: #{tpu_custom_call.1} parent=0 // pred_region
    _
  $region9: #{tpu_custom_call.1} parent=0 // pred_fallthru
    _
  // Predicated region
  $region10: #{tpu_custom_call.1} parent=0 // pred_check
    _
  $region11: #{tpu_custom_call.1} parent=0 // pred_check_branch
    %19 = sbr.rel (0) target = $region13
  $region12: #{tpu_custom_call.1} parent=0 // pred_region
    _
  $region13: #{tpu_custom_call.1} parent=0 // pred_fallthru
    _
  // Predicated region
  $region14: #{tpu_custom_call.1} parent=0 // pred_check
    _
  $region15: #{tpu_custom_call.1} parent=0 // pred_check_branch
    %21 = sbr.rel (0) target = $region17
  $region16: #{tpu_custom_call.1} parent=0 // pred_region
    _
  $region17: #{tpu_custom_call.1} parent=0 // pred_fallthru
    _
  // Predicated region
  $region18: #{tpu_custom_call.1} parent=0 // pred_check
    _
  $region19: #{tpu_custom_call.1} parent=0 // pred_check_branch
    %23 = sbr.rel (0) target = $region21
  $region20: #{tpu_custom_call.1} parent=0 // pred_region
    _
  $region21: #{tpu_custom_call.1} parent=0 // pred_fallthru
    _
  // Predicated region
  $region22: #{tpu_custom_call.1} parent=0 // pred_check
    _
  $region23: #{tpu_custom_call.1} parent=0 // pred_check_branch
    %25 = sbr.rel (0) target = $region25
  $region24: #{tpu_custom_call.1} parent=0 // pred_region
    _
  $region25: #{tpu_custom_call.1} parent=0 // pred_fallthru
    _
  // Predicated region
  $region26: #{tpu_custom_call.1} parent=0 // pred_check
    _
  $region27: #{tpu_custom_call.1} parent=0 // pred_check_branch
    %27 = sbr.rel (0) target = $region29
  $region28: #{tpu_custom_call.1} parent=0 // pred_region
    _
  $region29: #{tpu_custom_call.1} parent=0 // pred_fallthru
    _
  %v29 = vld [vmem:[%s0] sm:$0xf]
  %v30 = vld [vmem:[%s0 + $0x4] sm:$0xf]
  %v31 = vld [vmem:[%s1] sm:$0xf]
  %v32 = vld [vmem:[%s2] sm:$0x1]
  %v34 = vlaneseq
  %v35 = vshrl.u32 %v34, 7
  %v36 = vsub.s32 0, %v35
  %v37 = vrot.slane %v32, %v36
  %v41 = vunpack.c.l.b16 %v29
  %v42 = vunpack.c.l.b16 %v30
  %v43 = vpack.c.b16 %v42, %v41
  %vm44 = vcmask 64512
  %v46 = vsel %vm44, %v43, 0
  %vm48 = vcmask 1043456
  %v50 = vsel %vm48, %v31, 0
  %52 = vmatprep.subr.bf16.mxu0 0
  %53 = vmatpush1.bf16.msra.mxu0 %v50
  %54 = vmatprep.subr.bf16.mxu0 0
  %55 = vmatpush1.bf16.msra.mxu0 0
  %56 = vmatprep.subr.bf16.mxu0 0
  %57 = vmatpush1.bf16.msra.mxu0 0
  %58 = vmatprep.subr.bf16.mxu0 0
  %59 = vmatpush1.bf16.msra.mxu0 0
  %60 = vmatprep.subr.bf16.mxu0 0
  %61 = vmatpush1.bf16.msra.mxu0 0
  %62 = vmatprep.subr.bf16.mxu0 0
  %63 = vmatpush1.bf16.msra.mxu0 0
  %64 = vmatprep.subr.bf16.mxu0 0
  %65 = vmatpush1.bf16.msra.mxu0 0
  %66 = vmatprep.subr.bf16.mxu0 0
  %67 = vmatpush1.bf16.msra.mxu0 0
  %68 = vmatprep.subr.bf16.mxu0 0
  %69 = vmatpush1.bf16.msra.mxu0 0
  %70 = vmatprep.subr.bf16.mxu0 0
  %71 = vmatpush1.bf16.msra.mxu0 0
  %72 = vmatprep.subr.bf16.mxu0 0
  %73 = vmatpush1.bf16.msra.mxu0 0
  %74 = vmatprep.subr.bf16.mxu0 0
  %75 = vmatpush1.bf16.msra.mxu0 0
  %76 = vmatprep.subr.bf16.mxu0 0
  %77 = vmatpush1.bf16.msra.mxu0 0
  %78 = vmatprep.subr.bf16.mxu0 0
  %79 = vmatpush1.bf16.msra.mxu0 0
  %80 = vmatprep.subr.bf16.mxu0 0
  %81 = vmatpush1.bf16.msra.mxu0 0
  %82 = vmatprep.subr.bf16.mxu0 0
  %83 = vmatpush1.bf16.msra.mxu0 0
  %84 = vmatprep.mubr.bf16.mxu0 0
  %85 = vmatmul.mubr.bf16.gmra.mrb[0].mxu0 %v46
  %v86 = vpop.f32.mrb[0].mxu0
  %v87 = vadd.f32 %v37, %v86
  %v88 = vpop.f32.mrb[0].mxu0
  %v89 = vpop.f32.mrb[0].mxu0
  %v90 = vadd.f32 %v37, %v89
  %v91 = vpop.f32.mrb[0].mxu0
  %92 = vdwg.mxu0
  %v93 = vmax.f32 %v87, 0.0
  %v94 = vmax.f32 %v90, 0.0
  %v95 = vpack.c.bf16 %v94, %v93
  %v96 = vld [vmem:[%s3] sm:$0xf]
  %v97 = vld [vmem:[%s3 + $0x4] sm:$0xf]
  %v98 = vld [vmem:[%s3 + $0x8] sm:$0xf]
  %v99 = vld [vmem:[%s3 + $0xc] sm:$0xf]
  %v100 = vld [vmem:[%s3 + $0x10] sm:$0xf]
  %v101 = vld [vmem:[%s3 + $0x14] sm:$0xf]
  %v102 = vld [vmem:[%s3 + $0x18] sm:$0xf]
  %v103 = vld [vmem:[%s3 + $0x1c] sm:$0xf]
  %v104 = vld [vmem:[%s3 + $0x20] sm:$0xf]
  %v105 = vld [vmem:[%s3 + $0x24] sm:$0xf]
  %v106 = vld [vmem:[%s3 + $0x28] sm:$0xf]
  %v107 = vld [vmem:[%s3 + $0x2c] sm:$0xf]
  %v108 = vld [vmem:[%s3 + $0x30] sm:$0xf]
  %v109 = vld [vmem:[%s3 + $0x34] sm:$0xf]
  %v110 = vld [vmem:[%s3 + $0x38] sm:$0xf]
  %v111 = vld [vmem:[%s3 + $0x3c] sm:$0xf]
  %v112 = vld [vmem:[%s4] sm:$0x1]
  %v114 = vlaneseq
  %v115 = vshrl.u32 %v114, 7
  %v116 = vsub.s32 0, %v115
  %v117 = vrot.slane %v112, %v116
  %v135 = vunpack.c.l.b16 %v96
  %v136 = vunpack.c.l.b16 %v97
  %v137 = vunpack.c.l.b16 %v98
  %v138 = vunpack.c.l.b16 %v99
  %v139 = vunpack.c.l.b16 %v100
  %v140 = vunpack.c.l.b16 %v101
  %v141 = vunpack.c.l.b16 %v102
  %v142 = vunpack.c.l.b16 %v103
  %v143 = vunpack.c.l.b16 %v104
  %v144 = vunpack.c.l.b16 %v105
  %v145 = vunpack.c.l.b16 %v106
  %v146 = vunpack.c.l.b16 %v107
  %v147 = vunpack.c.l.b16 %v108
  %v148 = vunpack.c.l.b16 %v109
  %v149 = vunpack.c.l.b16 %v110
  %v150 = vunpack.c.l.b16 %v111
  %v151 = vpack.c.b16 %v136, %v135
  %v152 = vpack.c.b16 %v138, %v137
  %v153 = vpack.c.b16 %v140, %v139
  %v154 = vpack.c.b16 %v142, %v141
  %v155 = vpack.c.b16 %v144, %v143
  %v156 = vpack.c.b16 %v146, %v145
  %v157 = vpack.c.b16 %v148, %v147
  %v158 = vpack.c.b16 %v150, %v149
  %167 = vmatprep.subr.bf16.mxu0 0
  %168 = vmatpush1.bf16.msra.mxu0 %v151
  %169 = vmatprep.subr.bf16.mxu0 0
  %170 = vmatpush1.bf16.msra.mxu0 %v152
  %171 = vmatprep.subr.bf16.mxu0 0
  %172 = vmatpush1.bf16.msra.mxu0 %v153
  %173 = vmatprep.subr.bf16.mxu0 0
  %174 = vmatpush1.bf16.msra.mxu0 %v154
  %175 = vmatprep.subr.bf16.mxu0 0
  %176 = vmatpush1.bf16.msra.mxu0 %v155
  %177 = vmatprep.subr.bf16.mxu0 0
  %178 = vmatpush1.bf16.msra.mxu0 %v156
  %179 = vmatprep.subr.bf16.mxu0 0
  %180 = vmatpush1.bf16.msra.mxu0 %v157
  %181 = vmatprep.subr.bf16.mxu0 0
  %182 = vmatpush1.bf16.msra.mxu0 %v158
  %183 = vmatprep.subr.bf16.mxu0 0
  %184 = vmatpush1.bf16.msra.mxu0 0
  %185 = vmatprep.subr.bf16.mxu0 0
  %186 = vmatpush1.bf16.msra.mxu0 0
  %187 = vmatprep.subr.bf16.mxu0 0
  %188 = vmatpush1.bf16.msra.mxu0 0
  %189 = vmatprep.subr.bf16.mxu0 0
  %190 = vmatpush1.bf16.msra.mxu0 0
  %191 = vmatprep.subr.bf16.mxu0 0
  %192 = vmatpush1.bf16.msra.mxu0 0
  %193 = vmatprep.subr.bf16.mxu0 0
  %194 = vmatpush1.bf16.msra.mxu0 0
  %195 = vmatprep.subr.bf16.mxu0 0
  %196 = vmatpush1.bf16.msra.mxu0 0
  %197 = vmatprep.subr.bf16.mxu0 0
  %198 = vmatpush1.bf16.msra.mxu0 0
  %199 = vmatprep.mubr.bf16.mxu0 0
  %200 = vmatmul.mubr.bf16.gmra.mrb[0].mxu0 %v95
  %v201 = vpop.f32.mrb[0].mxu0
  %v202 = vadd.f32 %v117, %v201
  %v203 = vpop.f32.mrb[0].mxu0
  %v204 = vpop.f32.mrb[0].mxu0
  %v205 = vadd.f32 %v117, %v204
  %v206 = vpop.f32.mrb[0].mxu0
  %207 = vdwg.mxu0
  %v208 = vmax.f32 %v202, 0.0
  %v209 = vmax.f32 %v205, 0.0
  %v210 = vpack.c.bf16 %v209, %v208
  %v211 = vld [vmem:[%s5] sm:$0xf]
  %v212 = vld [vmem:[%s5 + $0x4] sm:$0xf]
  %v213 = vld [vmem:[%s5 + $0x8] sm:$0xf]
  %v214 = vld [vmem:[%s5 + $0xc] sm:$0xf]
  %v215 = vld [vmem:[%s5 + $0x10] sm:$0xf]
  %v216 = vld [vmem:[%s5 + $0x14] sm:$0xf]
  %v217 = vld [vmem:[%s5 + $0x18] sm:$0xf]
  %v218 = vld [vmem:[%s5 + $0x1c] sm:$0xf]
  %v219 = vld [vmem:[%s5 + $0x20] sm:$0xf]
  %v220 = vld [vmem:[%s5 + $0x24] sm:$0xf]
  %v221 = vld [vmem:[%s5 + $0x28] sm:$0xf]
  %v222 = vld [vmem:[%s5 + $0x2c] sm:$0xf]
  %v223 = vld [vmem:[%s5 + $0x30] sm:$0xf]
  %v224 = vld [vmem:[%s5 + $0x34] sm:$0xf]
  %v225 = vld [vmem:[%s5 + $0x38] sm:$0xf]
  %v226 = vld [vmem:[%s5 + $0x3c] sm:$0xf]
  %v227 = vld [vmem:[%s6] sm:$0x1]
  %v229 = vlaneseq
  %v230 = vshrl.u32 %v229, 7
  %v231 = vsub.s32 0, %v230
  %v232 = vrot.slane %v227, %v231
  %v250 = vunpack.c.l.b16 %v211
  %v251 = vunpack.c.l.b16 %v212
  %v252 = vunpack.c.l.b16 %v213
  %v253 = vunpack.c.l.b16 %v214
  %v254 = vunpack.c.l.b16 %v215
  %v255 = vunpack.c.l.b16 %v216
  %v256 = vunpack.c.l.b16 %v217
  %v257 = vunpack.c.l.b16 %v218
  %v258 = vunpack.c.l.b16 %v219
  %v259 = vunpack.c.l.b16 %v220
  %v260 = vunpack.c.l.b16 %v221
  %v261 = vunpack.c.l.b16 %v222
  %v262 = vunpack.c.l.b16 %v223
  %v263 = vunpack.c.l.b16 %v224
  %v264 = vunpack.c.l.b16 %v225
  %v265 = vunpack.c.l.b16 %v226
  %v266 = vpack.c.b16 %v251, %v250
  %v267 = vpack.c.b16 %v253, %v252
  %v268 = vpack.c.b16 %v255, %v254
  %v269 = vpack.c.b16 %v257, %v256
  %v270 = vpack.c.b16 %v259, %v258
  %v271 = vpack.c.b16 %v261, %v260
  %v272 = vpack.c.b16 %v263, %v262
  %v273 = vpack.c.b16 %v265, %v264
  %282 = vmatprep.subr.bf16.mxu0 0
  %283 = vmatpush1.bf16.msra.mxu0 %v266
  %284 = vmatprep.subr.bf16.mxu0 0
  %285 = vmatpush1.bf16.msra.mxu0 %v267
  %286 = vmatprep.subr.bf16.mxu0 0
  %287 = vmatpush1.bf16.msra.mxu0 %v268
  %288 = vmatprep.subr.bf16.mxu0 0
  %289 = vmatpush1.bf16.msra.mxu0 %v269
  %290 = vmatprep.subr.bf16.mxu0 0
  %291 = vmatpush1.bf16.msra.mxu0 %v270
  %292 = vmatprep.subr.bf16.mxu0 0
  %293 = vmatpush1.bf16.msra.mxu0 %v271
  %294 = vmatprep.subr.bf16.mxu0 0
  %295 = vmatpush1.bf16.msra.mxu0 %v272
  %296 = vmatprep.subr.bf16.mxu0 0
  %297 = vmatpush1.bf16.msra.mxu0 %v273
  %298 = vmatprep.subr.bf16.mxu0 0
  %299 = vmatpush1.bf16.msra.mxu0 0
  %300 = vmatprep.subr.bf16.mxu0 0
  %301 = vmatpush1.bf16.msra.mxu0 0
  %302 = vmatprep.subr.bf16.mxu0 0
  %303 = vmatpush1.bf16.msra.mxu0 0
  %304 = vmatprep.subr.bf16.mxu0 0
  %305 = vmatpush1.bf16.msra.mxu0 0
  %306 = vmatprep.subr.bf16.mxu0 0
  %307 = vmatpush1.bf16.msra.mxu0 0
  %308 = vmatprep.subr.bf16.mxu0 0
  %309 = vmatpush1.bf16.msra.mxu0 0
  %310 = vmatprep.subr.bf16.mxu0 0
  %311 = vmatpush1.bf16.msra.mxu0 0
  %312 = vmatprep.subr.bf16.mxu0 0
  %313 = vmatpush1.bf16.msra.mxu0 0
  %314 = vmatprep.mubr.bf16.mxu0 0
  %315 = vmatmul.mubr.bf16.gmra.mrb[0].mxu0 %v210
  %v316 = vpop.f32.mrb[0].mxu0
  %v317 = vadd.f32 %v232, %v316
  %v318 = vpop.f32.mrb[0].mxu0
  %v319 = vpop.f32.mrb[0].mxu0
  %v320 = vadd.f32 %v232, %v319
  %v321 = vpop.f32.mrb[0].mxu0
  %322 = vdwg.mxu0
  %324 = vset.pattern.permute.xlu0 4
  %325 = vperm.xlu0 %324, %v317
  %v326 = vpop.permute.xlu0 %325
  %329 = vset.pattern.permute.xlu0 4
  %330 = vperm.xlu0 %329, %v320
  %v331 = vpop.permute.xlu0 %330
  %v333 = vadd.f32 %v317, %v326
  %v334 = vadd.f32 %v320, %v331
  %335 = vst.msk [vmem:[%s7] sm:$0xff] %vm44, %v333
  %336 = vst.msk [vmem:[%s7 + $0x8] sm:$0xff] %vm44, %v334
  %v337 = vlaneseq
  %v338 = vand.u32 %v337, 127
  %vm339 = vcmp.lt.s32.totalorder %v338, 4
  %v340 = vsel %vm339, %v317, 0.0
  %v341 = vsel %vm339, %v320, 0.0
  %v342 = vsel %vm44, %v340, 0.0
  %343 = vadd.xlane.f32.xlu0 %v342
  %v344 = vpop.xlane.xlu0 %343
  %v345 = vsel %vm44, %v341, 0.0
  %346 = vadd.xlane.f32.xlu0 %v345
  %v347 = vpop.xlane.xlu0 %346
  %vm348 = vcmask 7168
  %349 = vst.msk [vmem:[%s8] sm:$0xff] %vm348, %v344
  %350 = vst.msk [vmem:[%s8 + $0x8] sm:$0xff] %vm348, %v347
  // Predicated region
  $region30: #{tpu_custom_call.1} parent=0 // pred_check
    _
  $region31: #{tpu_custom_call.1} parent=0 // pred_check_branch
    %352 = sbr.rel (0) target = $region33
  $region32: #{tpu_custom_call.1} parent=0 // pred_region
    _
  $region33: #{tpu_custom_call.1} parent=0 // pred_fallthru
    _
  // Predicated region
  $region34: #{tpu_custom_call.1} parent=0 // pred_check
    _
  $region35: #{tpu_custom_call.1} parent=0 // pred_check_branch
    %354 = sbr.rel (0) target = $region37
  $region36: #{tpu_custom_call.1} parent=0 // pred_region
    _
  $region37: #{tpu_custom_call.1} parent=0 // pred_fallthru
    _
  // Predicated region
  $region38: #{tpu_custom_call.1} parent=0 // pred_check
    _
  $region39: #{tpu_custom_call.1} parent=0 // pred_check_branch
    %356 = sbr.rel (0) target = $region41
  $region40: #{tpu_custom_call.1} parent=0 // pred_region
    _
  $region41: #{tpu_custom_call.1} parent=0 // pred_fallthru
    _
  // Predicated region
  $region42: #{tpu_custom_call.1} parent=0 // pred_check
    _
  $region43: #{tpu_custom_call.1} parent=0 // pred_check_branch
    %358 = sbr.rel (0) target = $region45
  $region44: #{tpu_custom_call.1} parent=0 // pred_region
    _
  $region45: #{tpu_custom_call.1} parent=0 // pred_fallthru
    _

</llo_original>
